<compile_context>
chip_gen: v6e
topology: v6e:2x2x1
jax: 0.10.0
libtpu: 0.0.40
codegen_flags: <defaults>
</compile_context>

<pallas_src>
import functools

import jax
import jax.numpy as jnp
from jax import lax
from jax.experimental import pallas as pl
from jax.experimental.pallas import tpu as pltpu


def _pow_static(x, p):
    """x ** p for a static Python-float exponent, matching torch.pow semantics
    for the cases lp_pool2d exercises (NaN for negative base, fractional p)."""
    p = float(p)
    if p == 1.0:
        return x
    if p == 2.0:
        return x * x
    if p == 0.5:
        return jnp.sqrt(x)                      # NaN for x < 0, same as pow(x, .5)
    if p.is_integer() and abs(p) <= 16:
        return lax.integer_pow(x, int(p))       # sign-correct for negative bases
    # General fractional exponent: exp(p*log(x)) on the EUP; NaN for x < 0
    # (matches torch.pow for non-integer exponents).
    return jnp.power(x, jnp.float32(p))


def _lp_pool_kernel(x_ref, o_ref, acc_ref, *, p, L, bl, needs_mask):
    """Accumulate sum(x**p) over the H*W axis across the last grid dim, then
    apply the 1/p root on the final reduction step."""
    k = pl.program_id(1)

    @pl.when(k == 0)
    def _():
        acc_ref[...] = jnp.zeros_like(acc_ref)

    x = x_ref[...].astype(jnp.float32)          # accumulate window sum in f32
    xp = _pow_static(x, p)                      # x ** p
    if needs_mask:
        lane = lax.broadcasted_iota(jnp.int32, x.shape, 1) + k * bl
        xp = jnp.where(lane < L, xp, 0.0)
    acc_ref[...] += jnp.sum(xp, axis=-1, keepdims=True)

    @pl.when(k == pl.num_programs(1) - 1)
    def _():
        o_ref[...] = _pow_static(acc_ref[...], 1.0 / p).astype(o_ref.dtype)


def adaptive_lp_pool2d(x, norm_type, stride=None, ceil_mode=False):
    """Pallas equivalent of AdaptiveLPPool2d(norm_type, stride, ceil_mode)(x)."""
    # kernel_size == (H, W): only one window fits, so stride/ceil_mode cannot
    # change the (1, 1) output grid -> they are mathematical no-ops here.
    del stride, ceil_mode
    N, C, H, W = x.shape
    R = N * C
    L = H * W
    dtype = x.dtype
    itemsize = jnp.dtype(dtype).itemsize

    x2d = x.reshape(R, L)                       # contiguous view, no data copy

    # --- tile sizing: cap one input block at ~2 MiB -------------------------
    BLOCK_BYTES = 2 * 1024 * 1024
    # Row tile: multiple of 8 (sublane rule) unless it covers the full extent.
    br = min(R, 256)
    if br < R:
        br = max(8, (br // 8) * 8)
    # Lane tile: full L if it fits the per-block budget, else a multiple of 128
    # (partial trailing block handled with an in-kernel mask).
    bl_budget = max(1, BLOCK_BYTES // max(br * itemsize, 1))
    if L <= bl_budget:
        bl = L                                  # full extent: no 128-rule needed
    else:
        bl = max(128, (bl_budget // 128) * 128)
    nr = pl.cdiv(R, br)
    nl = pl.cdiv(L, bl)
    needs_mask = (bl < L) and (L % bl != 0)

    p = float(norm_type)
    kernel = functools.partial(
        _lp_pool_kernel, p=p, L=L, bl=bl, needs_mask=needs_mask
    )

    n_elem = R * L
    uses_eup = not (p in (1.0, 2.0) or (p.is_integer() and abs(p) <= 16))
    cost = pl.CostEstimate(
        flops=3 * n_elem,
        transcendentals=(2 * n_elem if uses_eup else R),
        bytes_accessed=n_elem * itemsize + R * itemsize,
    )

    out2d = pl.pallas_call(
        kernel,
        out_shape=jax.ShapeDtypeStruct((R, 1), dtype),
        grid=(nr, nl),
        in_specs=[pl.BlockSpec((br, bl), lambda i, k: (i, k))],
        out_specs=pl.BlockSpec((br, 1), lambda i, k: (i, 0)),
        scratch_shapes=[pltpu.VMEM((br, 1), jnp.float32)],
        compiler_params=pltpu.CompilerParams(
            dimension_semantics=("parallel", "arbitrary"),
            vmem_limit_bytes=32 * 1024 * 1024,
        ),
        cost_estimate=cost,
    )(x2d)

    return out2d.reshape(N, C, 1, 1)


def _reference(x, norm_type):
    """Plain-JAX reference mirroring F.lp_pool2d with a full-extent window."""
    p = float(norm_type)
    xf = x.astype(jnp.float32)
    xp = _pow_static(xf, p)
    s = jnp.sum(xp, axis=(2, 3), keepdims=True)
    return _pow_static(s, 1.0 / p).astype(x.dtype)


if __name__ == "__main__":
    key = jax.random.PRNGKey(0)
    # NCHW input, as the PyTorch module would receive.
    x = jax.random.normal(key, (2, 4, 16, 16), dtype=jnp.float32)

    ok = True
    tests = [
        (x, 2.0),                                    # L2 pool, mixed-sign input
        (jnp.abs(x), 3.0),                           # integer-exponent path
        (jnp.abs(x) + 0.1, 1.5),                     # fractional-exponent (EUP) path
        (jnp.abs(x).astype(jnp.bfloat16), 2.0),      # bf16 input path
    ]
    for inp, p in tests:
        out = jax.block_until_ready(adaptive_lp_pool2d(inp, p))
        ref = _reference(inp, p)
        if out.shape != (2, 4, 1, 1):
            ok = False
            continue
        outf = out.astype(jnp.float32)
        reff = ref.astype(jnp.float32)
        both_nan = jnp.isnan(outf) & jnp.isnan(reff)
        tol = 2e-2 if inp.dtype == jnp.bfloat16 else 1e-4
        close = jnp.isclose(outf, reff, rtol=tol, atol=tol) | both_nan
        if not bool(jnp.all(close)):
            ok = False

    if ok:
        print("KERNEL_OK")
</pallas_src>

<mosaic_0001>
module attributes {stable_mosaic.version = 11 : i64} {
  func.func @_lp_pool_kernel(%arg0: i32, %arg1: i32, %arg2: memref<8x256xf32, #tpu.memory_space<vmem>>, %arg3: memref<8x1xf32, #tpu.memory_space<vmem>>, %arg4: memref<8x1xf32, #tpu.memory_space<vmem>>) attributes {dimension_semantics = [#tpu.dimension_semantics<parallel>, #tpu.dimension_semantics<arbitrary>], iteration_bounds = array<i64: 1, 1>, scalar_prefetch = 0 : i64, scratch_operands = 1 : i64, tpu.core_type = #tpu.core_type<tc>, window_params = [{transform_indices = @transform_0, window_bounds = array<i64: 8, 256>}, {transform_indices = @transform_1, window_bounds = array<i64: 8, 1>}]} {
    %c0_i32 = arith.constant 0 : i32
    %0 = arith.cmpi eq, %arg1, %c0_i32 : i32
    %1 = arith.extui %0 : i1 to i32
    %c0_i32_0 = arith.constant 0 : i32
    %2 = arith.cmpi ne, %1, %c0_i32_0 : i32
    scf.if %2 {
      %cst_8 = arith.constant 0.000000e+00 : f32
      %13 = vector.broadcast %cst_8 : f32 to vector<8x1xf32>
      %c0_9 = arith.constant 0 : index
      %c0_10 = arith.constant 0 : index
      %14 = vector.load %arg4[%c0_9, %c0_10] : memref<8x1xf32, #tpu.memory_space<vmem>>, vector<8x1xf32>
      tpu.vector_store %arg4[%c0_9, %c0_10], %13 {strides = array<i32>} : memref<8x1xf32, #tpu.memory_space<vmem>>, vector<8x1xf32>,
    } else {
    }
    %c0 = arith.constant 0 : index
    %c0_1 = arith.constant 0 : index
    %3 = vector.load %arg2[%c0, %c0_1] : memref<8x256xf32, #tpu.memory_space<vmem>>, vector<8x256xf32>
    %4 = arith.mulf %3, %3 : vector<8x256xf32>
    %c0_2 = arith.constant 0 : index
    %c0_3 = arith.constant 0 : index
    %5 = vector.load %arg4[%c0_2, %c0_3] : memref<8x1xf32, #tpu.memory_space<vmem>>, vector<8x1xf32>
    %cst = arith.constant dense<0.000000e+00> : vector<8xf32>
    %6 = vector.multi_reduction <add>, %4, %cst [1] : vector<8x256xf32> to vector<8xf32>
    %7 = vector.shape_cast %6 : vector<8xf32> to vector<8x1xf32>
    %8 = arith.addf %5, %7 : vector<8x1xf32>
    %c0_4 = arith.constant 0 : index
    %c0_5 = arith.constant 0 : index
    %9 = vector.load %arg4[%c0_4, %c0_5] : memref<8x1xf32, #tpu.memory_space<vmem>>, vector<8x1xf32>
    tpu.vector_store %arg4[%c0_4, %c0_5], %8 {strides = array<i32>} : memref<8x1xf32, #tpu.memory_space<vmem>>, vector<8x1xf32>,
    %c0_i32_6 = arith.constant 0 : i32
    %10 = arith.cmpi eq, %arg1, %c0_i32_6 : i32
    %11 = arith.extui %10 : i1 to i32
    %c0_i32_7 = arith.constant 0 : i32
    %12 = arith.cmpi ne, %11, %c0_i32_7 : i32
    scf.if %12 {
      %c0_8 = arith.constant 0 : index
      %c0_9 = arith.constant 0 : index
      %13 = vector.load %arg4[%c0_8, %c0_9] : memref<8x1xf32, #tpu.memory_space<vmem>>, vector<8x1xf32>
      %14 = math.sqrt %13 : vector<8x1xf32>
      %c0_10 = arith.constant 0 : index
      %c0_11 = arith.constant 0 : index
      %15 = vector.load %arg3[%c0_10, %c0_11] : memref<8x1xf32, #tpu.memory_space<vmem>>, vector<8x1xf32>
      tpu.vector_store %arg3[%c0_10, %c0_11], %14 {strides = array<i32>} : memref<8x1xf32, #tpu.memory_space<vmem>>, vector<8x1xf32>,
    } else {
    }
    return
  }
  func.func @transform_0(%arg0: i32, %arg1: i32) -> (i32, i32) {
    %c0_i32 = arith.constant 0 : i32
    return %arg0, %arg1 : i32, i32
  }
  func.func @transform_1(%arg0: i32, %arg1: i32) -> (i32, i32) {
    %c0_i32 = arith.constant 0 : i32
    %c0_i32_0 = arith.constant 0 : i32
    return %arg0, %c0_i32 : i32, i32
  }
}

</mosaic_0001>

<llo_original>
// kernel: tpu_custom_call.1
$region0: #{tpu_custom_call.1}
  #allocation0 [shape = 'u32[]', space=smem, size = 0x4, offset = 0x4, fixed_abs, tag = 'smem constant byte address 0x4 - core index']
  #allocation1 [shape = 'u32[144,128]{1,0:T(1,128)}', space=vmem, size = 0x12000, scoped, tag = 'internal scratch']
  #allocation2 [shape = 'f32[8,1]{1,0:T(8,128)}', space=vmem, size = 0x1000, scoped, tag = 'scratch operand']
  %s0 = inlined_call_operand.hbm [shape: f32[8,256], index: 0, kind: input, shape index: {}]
  %s1 = inlined_call_operand.vmem [shape: f32[8,1], index: 1, kind: output, shape index: {}]
  %s2 = sld [smem:[#allocation0]]
  $region26: #{tpu_custom_call.1} parent=0
    _
  %s4 = ssub.s32 1, %s2
  %s5 = scalar_select 0, %s4, %s2
  $region1: #{tpu_custom_call.1} parent=0
    #allocation3 [shape = 'u8[8192]{0}', space=vmem, size = 0x2000, scoped, tag = 'input window, operand 0, single buffered']
    #allocation4 [shape = 's32[1]{0}', space=sflag, size = 0x4, scoped, tag = 'scoped memory for tpu_custom_call.1']
    %6 = vsyncpa [#allocation4], 0
    // Predicated region
    $region2: #{tpu_custom_call.1} parent=1 // pred_check
      _
    $region3: #{tpu_custom_call.1} parent=1 // pred_check_branch
      %8 = sbr.rel (0) target = $region5
    $region4: #{tpu_custom_call.1} parent=1 // pred_region
      %s10 = ssub.s32 256, 256
      %11 = vsyncadd [#allocation4], %s10
      %s13 = sshll.u32 [#allocation3], 4
      %s14 = int_to_ptr.vmem [resolvable:$true] %s13
      %16 = dma.hbm_to_vmem [thread:$0]  %s0, 256, %s14, [#allocation4]
    $region5: #{tpu_custom_call.1} parent=1 // pred_fallthru
      _
    // Predicated region
    $region6: #{tpu_custom_call.1} parent=1 // pred_check
      _
    $region7: #{tpu_custom_call.1} parent=1 // pred_check_branch
      %18 = sbr.rel (0) target = $region9
    $region8: #{tpu_custom_call.1} parent=1 // pred_region
      %19 = dma.done [#allocation4], 256
    $region9: #{tpu_custom_call.1} parent=1 // pred_fallthru
      _
    %p20 = scmp.eq.s32.totalorder 0, 0
    // Predicated region
    $region10: #{tpu_custom_call.1} parent=1 // pred_check
      %p21 = pneg %p20
    $region11: #{tpu_custom_call.1} parent=1 // pred_check_branch
      %23 = sbr.rel (%p21) target = $region13
    $region12: #{tpu_custom_call.1} parent=1 // pred_region
      %vm24 = vcmask 7168
      %25 = vst.msk [vmem:[#allocation2] sm:$0xff] %vm24, 0.0
    $region13: #{tpu_custom_call.1} parent=1 // pred_fallthru
      _
    %v26 = vld [vmem:[#allocation3] sm:$0xff]
    %v27 = vld [vmem:[#allocation3 + $0x8] sm:$0xff]
    %v28 = vmul.f32 %v26, %v26
    %v29 = vmul.f32 %v27, %v27
    %v30 = vld [vmem:[#allocation2] sm:$0xff]
    %v31 = vadd.f32 %v28, %v29
    %32 = vadd.xlane.f32.xlu0 %v31
    %v33 = vpop.xlane.xlu0 %32
    %v34 = vadd.f32 %v30, %v33
    %vm35 = vcmask 7168
    %36 = vst.msk [vmem:[#allocation2] sm:$0xff] %vm35, %v34
    // Predicated region
    $region14: #{tpu_custom_call.1} parent=1 // pred_check
      %p37 = pneg %p20
    $region15: #{tpu_custom_call.1} parent=1 // pred_check_branch
      %39 = sbr.rel (%p37) target = $region17
    $region16: #{tpu_custom_call.1} parent=1 // pred_region
      %v40 = vld [vmem:[#allocation2] sm:$0xff]
      %v41 = vrsqrt.pop %v40
      %v42 = vmul.f32 %v40, %v41
      %vm43 = vcmp.eq.f32.partialorder %v40, inf
      %v44 = vsel %vm43, %v40, %v42
      %vm45 = vcmp.eq.f32.partialorder %v40, 0.0
      %v46 = vand.u32 %v40, 2147483648
      %v47 = vsel %vm45, %v46, %v44
      %48 = vst.msk [vmem:[%s1] sm:$0xff] %vm35, %v47
    $region17: #{tpu_custom_call.1} parent=1 // pred_fallthru
      _
    // Predicated region
    $region18: #{tpu_custom_call.1} parent=1 // pred_check
      _
    $region19: #{tpu_custom_call.1} parent=1 // pred_check_branch
      %50 = sbr.rel (0) target = $region21
    $region20: #{tpu_custom_call.1} parent=1 // pred_region
      _
    $region21: #{tpu_custom_call.1} parent=1 // pred_fallthru
      _
    // Predicated region
    $region22: #{tpu_custom_call.1} parent=1 // pred_check
      _
    $region23: #{tpu_custom_call.1} parent=1 // pred_check_branch
      %52 = sbr.rel (0) target = $region25
    $region24: #{tpu_custom_call.1} parent=1 // pred_region
      _
    $region25: #{tpu_custom_call.1} parent=1 // pred_fallthru
      _
    %53 = vsyncpa [#allocation4], 1

</llo_original>
